<compile_context>
chip_gen: v5e
topology: v5e:2x2
jax: 0.10.0
libtpu: 0.0.40
codegen_flags: <defaults>
</compile_context>

<pallas_src>
import jax
import jax.numpy as jnp
from jax import lax
from jax.experimental import pallas as pl
from jax.experimental.pallas import tpu as pltpu


def _round_up(x, m):
    return ((x + m - 1) // m) * m


def _make_kernel(sub_rows, num_sub, compute_dtype):
    def feedforward_kernel(x_ref, w1_ref, b1_ref, w2_ref, b2_ref, o_ref):
        # x: (tm, C) in-dtype | w1: (C, H) compute | b1: (1, H) f32
        # w2: (H, C) compute  | b2: (1, C) f32     | o: (tm, C) in-dtype
        w1 = w1_ref[...]
        w2 = w2_ref[...]
        b1 = b1_ref[...].astype(jnp.float32)
        b2 = b2_ref[...].astype(jnp.float32)

        def body(j, carry):
            r = pl.multiple_of(j * sub_rows, sub_rows)
            x = x_ref[pl.ds(r, sub_rows), :].astype(compute_dtype)
            h = jnp.dot(x, w1, preferred_element_type=jnp.float32) + b1
            h = jnp.maximum(h, 0.0)                       # ReLU (VPU, free under MXU)
            y = jnp.dot(h.astype(compute_dtype), w2,
                        preferred_element_type=jnp.float32) + b2
            # Dropout(p=0.0) is the identity -> nothing to do.
            o_ref[pl.ds(r, sub_rows), :] = y.astype(o_ref.dtype)
            return carry

        lax.fori_loop(0, num_sub, body, 0, unroll=True)

    return feedforward_kernel


def feedforward(x, w1, b1, w2, b2, *, tm=None, compute_dtype=jnp.bfloat16,
                sub_rows=256):
    """x: (B, T, C) float32 -> (B, T, C) float32."""
    B, T, C = x.shape
    H = w1.shape[1]
    M = B * T
    x2d = x.reshape(M, C)                       # free reshape, no extra HBM pass

    x_item = jnp.dtype(x.dtype).itemsize
    w_item = jnp.dtype(compute_dtype).itemsize

    # ---- generation-aware VMEM budget (v7x: 64 MiB/TC, v5e/v6e: 128 MiB) ----
    try:
        vmem_cap = int(pltpu.get_tpu_info().vmem_capacity_bytes)
    except Exception:
        vmem_cap = 64 << 20                     # conservative default (v7x)
    if vmem_cap <= (64 << 20):                  # v7x: leave ~20% headroom
        tile_budget, vmem_limit_cap = 32 << 20, 52 << 20
    else:                                       # v5e / v6e: exploit 128 MiB
        tile_budget, vmem_limit_cap = 88 << 20, 110 << 20

    # Resident weights/biases (single-buffered, compute dtype; biases f32).
    weight_bytes = (C * H + H * C) * w_item + (H + C) * 4
    # TODO(synk): for transformer-scale C/H where w1+w2 exceed the VMEM budget, add an
    # H-axis reduction grid (VMEM f32 accumulator + pl.when init/finalize) instead of
    # letting tm collapse.

    # ---- choose the M tile: as large as the budget allows (no 512-row cap) ----
    if tm is None:
        fixed = weight_bytes + sub_rows * (H + C) * 4   # f32 intermediates per sub-tile
        per_row = 4 * C * x_item                        # double-buffered x + out tiles
        tm = max((tile_budget - fixed) // per_row, 8)
        tm = min(int(tm), 4096)                 # DMA already >1 MiB/step; bound code size
    tm = min(int(tm), _round_up(M, 8))
    if tm >= sub_rows:
        tm = (tm // sub_rows) * sub_rows        # whole sub-tiles per grid step
    else:
        tm = max(8, (tm // 8) * 8)
        sub_rows = tm
    num_sub = tm // sub_rows

    need = weight_bytes + 4 * tm * C * x_item + sub_rows * (H + C) * 4
    vmem_limit = int(min(max(2 * need, 32 << 20), vmem_limit_cap))

    # One-time cast of weights to the MXU-native compute dtype.
    w1c = w1.astype(compute_dtype)
    w2c = w2.astype(compute_dtype)
    b1c = b1.reshape(1, H).astype(jnp.float32)
    b2c = b2.reshape(1, C).astype(jnp.float32)

    cost = pl.CostEstimate(
        flops=4 * M * C * H,                    # two matmuls, 2*M*C*H each
        transcendentals=0,
        bytes_accessed=2 * M * C * x_item + weight_bytes,
    )

    kernel = _make_kernel(sub_rows, num_sub, compute_dtype)
    grid = (pl.cdiv(M, tm),)                    # partial last block masked by Pallas
    out_shape = jax.ShapeDtypeStruct((M, C), x.dtype)

    def _call(single_buffer_weights):
        wmode = ({"pipeline_mode": pl.Buffered(1)}
                 if single_buffer_weights else {})
        in_specs = [
            pl.BlockSpec((tm, C), lambda i: (i, 0)),            # x (pipelined)
            pl.BlockSpec((C, H), lambda i: (0, 0), **wmode),    # w1 (resident)
            pl.BlockSpec((1, H), lambda i: (0, 0), **wmode),    # b1 (resident)
            pl.BlockSpec((H, C), lambda i: (0, 0), **wmode),    # w2 (resident)
            pl.BlockSpec((1, C), lambda i: (0, 0), **wmode),    # b2 (resident)
        ]
        return pl.pallas_call(
            kernel,
            out_shape=out_shape,
            grid_spec=pltpu.PrefetchScalarGridSpec(
                num_scalar_prefetch=0,
                grid=grid,
                in_specs=in_specs,
                out_specs=pl.BlockSpec((tm, C), lambda i: (i, 0)),
            ),
            compiler_params=pltpu.CompilerParams(
                dimension_semantics=("parallel",),   # shard rows over v7x's 2 TCs
                vmem_limit_bytes=vmem_limit,
            ),
            cost_estimate=cost,
        )(x2d, w1c, b1c, w2c, b2c)

    try:
        out = _call(True)      # constant index_map -> single-buffered weights
    except Exception:
        out = _call(False)     # fall back if pipeline_mode is unsupported

    return out.reshape(B, T, C)


if __name__ == "__main__":
    n_embd = 64
    hidden = 4 * n_embd
    B, T = 2, 8

    key = jax.random.PRNGKey(0)
    kx, k1, kb1, k2, kb2 = jax.random.split(key, 5)

    # Deterministic init (PyTorch Linear uses U(-1/sqrt(fan_in), 1/sqrt(fan_in))).
    bound1 = 1.0 / jnp.sqrt(n_embd)
    bound2 = 1.0 / jnp.sqrt(hidden)
    w1 = jax.random.uniform(k1, (n_embd, hidden), jnp.float32, -bound1, bound1)
    b1 = jax.random.uniform(kb1, (hidden,), jnp.float32, -bound1, bound1)
    w2 = jax.random.uniform(k2, (hidden, n_embd), jnp.float32, -bound2, bound2)
    b2 = jax.random.uniform(kb2, (n_embd,), jnp.float32, -bound2, bound2)

    x = jax.random.normal(kx, (B, T, n_embd), jnp.float32)

    y = feedforward(x, w1, b1, w2, b2)
    y = jax.block_until_ready(y)

    # Reference check in plain f32 JAX (same math).
    ref = jnp.maximum(x.reshape(-1, n_embd) @ w1 + b1, 0.0) @ w2 + b2
    ref = ref.reshape(B, T, n_embd)
    assert y.shape == (B, T, n_embd)
    # bf16 MXU inputs with f32 accumulation -> relaxed tolerance vs the f32 reference.
    assert jnp.allclose(y, ref, atol=2e-2, rtol=2e-2)

    print("KERNEL_OK")
</pallas_src>

<mosaic_0001>
module attributes {stable_mosaic.version = 11 : i64} {
  func.func @feedforward_kernel(%arg0: i32, %arg1: memref<16x64xf32, #tpu.memory_space<vmem>>, %arg2: memref<64x256xbf16, #tpu.memory_space<vmem>>, %arg3: memref<1x256xf32, #tpu.memory_space<vmem>>, %arg4: memref<256x64xbf16, #tpu.memory_space<vmem>>, %arg5: memref<1x64xf32, #tpu.memory_space<vmem>>, %arg6: memref<16x64xf32, #tpu.memory_space<vmem>>) attributes {dimension_semantics = [#tpu.dimension_semantics<parallel>], iteration_bounds = array<i64: 1>, scalar_prefetch = 0 : i64, scratch_operands = 0 : i64, tpu.core_type = #tpu.core_type<tc>, window_params = [{transform_indices = @transform_0, window_bounds = array<i64: 16, 64>}, {pipeline_mode = #tpu.pipeline_mode<synchronous>, transform_indices = @transform_1, window_bounds = array<i64: 64, 256>}, {pipeline_mode = #tpu.pipeline_mode<synchronous>, transform_indices = @transform_2, window_bounds = array<i64: 1, 256>}, {pipeline_mode = #tpu.pipeline_mode<synchronous>, transform_indices = @transform_3, window_bounds = array<i64: 256, 64>}, {pipeline_mode = #tpu.pipeline_mode<synchronous>, transform_indices = @transform_4, window_bounds = array<i64: 1, 64>}, {transform_indices = @transform_5, window_bounds = array<i64: 16, 64>}]} {
    %c0 = arith.constant 0 : index
    %c0_0 = arith.constant 0 : index
    %0 = vector.load %arg2[%c0, %c0_0] : memref<64x256xbf16, #tpu.memory_space<vmem>>, vector<64x256xbf16>
    %c0_1 = arith.constant 0 : index
    %c0_2 = arith.constant 0 : index
    %1 = vector.load %arg4[%c0_1, %c0_2] : memref<256x64xbf16, #tpu.memory_space<vmem>>, vector<256x64xbf16>
    %c0_3 = arith.constant 0 : index
    %c0_4 = arith.constant 0 : index
    %2 = vector.load %arg3[%c0_3, %c0_4] : memref<1x256xf32, #tpu.memory_space<vmem>>, vector<1x256xf32>
    %c0_5 = arith.constant 0 : index
    %c0_6 = arith.constant 0 : index
    %3 = vector.load %arg5[%c0_5, %c0_6] : memref<1x64xf32, #tpu.memory_space<vmem>>, vector<1x64xf32>
    %c0_i32 = arith.constant 0 : i32
    %c16_i32 = arith.constant 16 : i32
    %4 = arith.muli %c0_i32, %c16_i32 : i32
    %5 = tpu.assume_multiple %4, 16 : i32
    %6 = arith.index_cast %5 : i32 to index
    %c0_7 = arith.constant 0 : index
    %7 = vector.load %arg1[%6, %c0_7] : memref<16x64xf32, #tpu.memory_space<vmem>>, vector<16x64xf32>
    %8 = arith.truncf %7 : vector<16x64xf32> to vector<16x64xbf16>
    %cst = arith.constant dense<0.000000e+00> : vector<16x256xf32>
    %9 = tpu.matmul %8, %0, %cst {dimension_numbers = #tpu.dot_dimension_numbers<[1], [0], [0], [1], [0, 0, 1, 1], [], []>} : vector<16x64xbf16>, vector<64x256xbf16>, vector<16x256xf32> -> vector<16x256xf32>
    %10 = vector.broadcast %2 : vector<1x256xf32> to vector<16x256xf32>
    %11 = arith.addf %9, %10 : vector<16x256xf32>
    %cst_8 = arith.constant 0.000000e+00 : f32
    %12 = vector.broadcast %cst_8 : f32 to vector<16x256xf32>
    %13 = arith.maximumf %11, %12 : vector<16x256xf32>
    %14 = arith.truncf %13 : vector<16x256xf32> to vector<16x256xbf16>
    %cst_9 = arith.constant dense<0.000000e+00> : vector<16x64xf32>
    %15 = tpu.matmul %14, %1, %cst_9 {dimension_numbers = #tpu.dot_dimension_numbers<[1], [0], [0], [1], [0, 0, 1, 1], [], []>} : vector<16x256xbf16>, vector<256x64xbf16>, vector<16x64xf32> -> vector<16x64xf32>
    %16 = vector.broadcast %3 : vector<1x64xf32> to vector<16x64xf32>
    %17 = arith.addf %15, %16 : vector<16x64xf32>
    %18 = arith.index_cast %5 : i32 to index
    %c0_10 = arith.constant 0 : index
    %19 = vector.load %arg6[%18, %c0_10] : memref<16x64xf32, #tpu.memory_space<vmem>>, vector<16x64xf32>
    tpu.vector_store %arg6[%18, %c0_10], %17 {strides = array<i32>} : memref<16x64xf32, #tpu.memory_space<vmem>>, vector<16x64xf32>,
    %c1_i32 = arith.constant 1 : i32
    return
  }
  func.func @transform_0(%arg0: i32) -> (i32, i32) {
    %c0_i32 = arith.constant 0 : i32
    %c0_i32_0 = arith.constant 0 : i32
    return %arg0, %c0_i32 : i32, i32
  }
  func.func @transform_1(%arg0: i32) -> (i32, i32) {
    %c0_i32 = arith.constant 0 : i32
    %c0_i32_0 = arith.constant 0 : i32
    %c0_i32_1 = arith.constant 0 : i32
    return %c0_i32, %c0_i32_0 : i32, i32
  }
  func.func @transform_2(%arg0: i32) -> (i32, i32) {
    %c0_i32 = arith.constant 0 : i32
    %c0_i32_0 = arith.constant 0 : i32
    %c0_i32_1 = arith.constant 0 : i32
    return %c0_i32, %c0_i32_0 : i32, i32
  }
  func.func @transform_3(%arg0: i32) -> (i32, i32) {
    %c0_i32 = arith.constant 0 : i32
    %c0_i32_0 = arith.constant 0 : i32
    %c0_i32_1 = arith.constant 0 : i32
    return %c0_i32, %c0_i32_0 : i32, i32
  }
  func.func @transform_4(%arg0: i32) -> (i32, i32) {
    %c0_i32 = arith.constant 0 : i32
    %c0_i32_0 = arith.constant 0 : i32
    %c0_i32_1 = arith.constant 0 : i32
    return %c0_i32, %c0_i32_0 : i32, i32
  }
  func.func @transform_5(%arg0: i32) -> (i32, i32) {
    %c0_i32 = arith.constant 0 : i32
    %c0_i32_0 = arith.constant 0 : i32
    return %arg0, %c0_i32 : i32, i32
  }
}

module attributes {stable_mosaic.version = 11 : i64} {
  func.func @feedforward_kernel(%arg0: i32, %arg1: memref<16x64xf32, #tpu.memory_space<vmem>>, %arg2: memref<64x256xbf16, #tpu.memory_space<vmem>>, %arg3: memref<1x256xf32, #tpu.memory_space<vmem>>, %arg4: memref<256x64xbf16, #tpu.memory_space<vmem>>, %arg5: memref<1x64xf32, #tpu.memory_space<vmem>>, %arg6: memref<16x64xf32, #tpu.memory_space<vmem>>) attributes {dimension_semantics = [#tpu.dimension_semantics<parallel>], iteration_bounds = array<i64: 1>, scalar_prefetch = 0 : i64, scratch_operands = 0 : i64, tpu.core_type = #tpu.core_type<tc>, window_params = [{transform_indices = @transform_0, window_bounds = array<i64: 16, 64>}, {pipeline_mode = #tpu.pipeline_mode<synchronous>, transform_indices = @transform_1, window_bounds = array<i64: 64, 256>}, {pipeline_mode = #tpu.pipeline_mode<synchronous>, transform_indices = @transform_2, window_bounds = array<i64: 1, 256>}, {pipeline_mode = #tpu.pipeline_mode<synchronous>, transform_indices = @transform_3, window_bounds = array<i64: 256, 64>}, {pipeline_mode = #tpu.pipeline_mode<synchronous>, transform_indices = @transform_4, window_bounds = array<i64: 1, 64>}, {transform_indices = @transform_5, window_bounds = array<i64: 16, 64>}]} {
    %c0 = arith.constant 0 : index
    %c0_0 = arith.constant 0 : index
    %0 = vector.load %arg2[%c0, %c0_0] : memref<64x256xbf16, #tpu.memory_space<vmem>>, vector<64x256xbf16>
    %c0_1 = arith.constant 0 : index
    %c0_2 = arith.constant 0 : index
    %1 = vector.load %arg4[%c0_1, %c0_2] : memref<256x64xbf16, #tpu.memory_space<vmem>>, vector<256x64xbf16>
    %c0_3 = arith.constant 0 : index
    %c0_4 = arith.constant 0 : index
    %2 = vector.load %arg3[%c0_3, %c0_4] : memref<1x256xf32, #tpu.memory_space<vmem>>, vector<1x256xf32>
    %c0_5 = arith.constant 0 : index
    %c0_6 = arith.constant 0 : index
    %3 = vector.load %arg5[%c0_5, %c0_6] : memref<1x64xf32, #tpu.memory_space<vmem>>, vector<1x64xf32>
    %c0_i32 = arith.constant 0 : i32
    %c16_i32 = arith.constant 16 : i32
    %4 = arith.muli %c0_i32, %c16_i32 : i32
    %5 = tpu.assume_multiple %4, 16 : i32
    %6 = arith.index_cast %5 : i32 to index
    %c0_7 = arith.constant 0 : index
    %7 = vector.load %arg1[%6, %c0_7] : memref<16x64xf32, #tpu.memory_space<vmem>>, vector<16x64xf32>
    %8 = arith.truncf %7 : vector<16x64xf32> to vector<16x64xbf16>
    %cst = arith.constant dense<0.000000e+00> : vector<16x256xf32>
    %9 = tpu.matmul %8, %0, %cst {dimension_numbers = #tpu.dot_dimension_numbers<[1], [0], [0], [1], [0, 0, 1, 1], [], []>} : vector<16x64xbf16>, vector<64x256xbf16>, vector<16x256xf32> -> vector<16x256xf32>
    %10 = vector.broadcast %2 : vector<1x256xf32> to vector<16x256xf32>
    %11 = arith.addf %9, %10 : vector<16x256xf32>
    %cst_8 = arith.constant 0.000000e+00 : f32
    %12 = vector.broadcast %cst_8 : f32 to vector<16x256xf32>
    %13 = arith.maximumf %11, %12 : vector<16x256xf32>
    %14 = arith.truncf %13 : vector<16x256xf32> to vector<16x256xbf16>
    %cst_9 = arith.constant dense<0.000000e+00> : vector<16x64xf32>
    %15 = tpu.matmul %14, %1, %cst_9 {dimension_numbers = #tpu.dot_dimension_numbers<[1], [0], [0], [1], [0, 0, 1, 1], [], []>} : vector<16x256xbf16>, vector<256x64xbf16>, vector<16x64xf32> -> vector<16x64xf32>
    %16 = vector.broadcast %3 : vector<1x64xf32> to vector<16x64xf32>
    %17 = arith.addf %15, %16 : vector<16x64xf32>
    %18 = arith.index_cast %5 : i32 to index
    %c0_10 = arith.constant 0 : index
    %19 = vector.load %arg6[%18, %c0_10] : memref<16x64xf32, #tpu.memory_space<vmem>>, vector<16x64xf32>
    tpu.vector_store %arg6[%18, %c0_10], %17 {strides = array<i32>} : memref<16x64xf32, #tpu.memory_space<vmem>>, vector<16x64xf32>,
    %c1_i32 = arith.constant 1 : i32
    return
  }
  func.func @transform_0(%arg0: i32) -> (i32, i32) {
    %c0_i32 = arith.constant 0 : i32
    %c0_i32_0 = arith.constant 0 : i32
    return %arg0, %c0_i32 : i32, i32
  }
  func.func @transform_1(%arg0: i32) -> (i32, i32) {
    %c0_i32 = arith.constant 0 : i32
    %c0_i32_0 = arith.constant 0 : i32
    %c0_i32_1 = arith.constant 0 : i32
    return %c0_i32, %c0_i32_0 : i32, i32
  }
  func.func @transform_2(%arg0: i32) -> (i32, i32) {
    %c0_i32 = arith.constant 0 : i32
    %c0_i32_0 = arith.constant 0 : i32
    %c0_i32_1 = arith.constant 0 : i32
    return %c0_i32, %c0_i32_0 : i32, i32
  }
  func.func @transform_3(%arg0: i32) -> (i32, i32) {
    %c0_i32 = arith.constant 0 : i32
    %c0_i32_0 = arith.constant 0 : i32
    %c0_i32_1 = arith.constant 0 : i32
    return %c0_i32, %c0_i32_0 : i32, i32
  }
  func.func @transform_4(%arg0: i32) -> (i32, i32) {
    %c0_i32 = arith.constant 0 : i32
    %c0_i32_0 = arith.constant 0 : i32
    %c0_i32_1 = arith.constant 0 : i32
    return %c0_i32, %c0_i32_0 : i32, i32
  }
  func.func @transform_5(%arg0: i32) -> (i32, i32) {
    %c0_i32 = arith.constant 0 : i32
    %c0_i32_0 = arith.constant 0 : i32
    return %arg0, %c0_i32 : i32, i32
  }
}

</mosaic_0001>

<llo_original>
// kernel: tpu_custom_call.1
$region0: #{tpu_custom_call.1}
  #allocation0 [shape = 'u32[]', space=smem, size = 0x4, offset = 0x4, fixed_abs, tag = 'smem constant byte address 0x4 - core index']
  #allocation1 [shape = 'u32[72,128]{1,0:T(1,128)}', space=vmem, size = 0x9000, scoped, tag = 'internal scratch']
  %s0 = inlined_call_operand.vmem [shape: f32[16,64], index: 0, kind: input, shape index: {}]
  %s1 = inlined_call_operand.vmem [shape: bf16[64,256], index: 1, kind: input, shape index: {}]
  %s2 = inlined_call_operand.vmem [shape: f32[1,256], index: 2, kind: input, shape index: {}]
  %s3 = inlined_call_operand.vmem [shape: bf16[256,64], index: 3, kind: input, shape index: {}]
  %s4 = inlined_call_operand.vmem [shape: f32[1,64], index: 4, kind: input, shape index: {}]
  %s5 = inlined_call_operand.hbm [shape: f32[16,64], index: 5, kind: output, shape index: {}]
  %s6 = sld [smem:[#allocation0]]
  $region30: #{tpu_custom_call.1} parent=0
    _
  %s8 = ssub.s32 1, %s6
  %s9 = scalar_select 0, %s8, %s6
  $region1: #{tpu_custom_call.1} parent=0
    #allocation2 [shape = 'u8[8192]{0}', space=vmem, size = 0x2000, scoped, tag = 'output window, operand 0, single buffered']
    #allocation3 [shape = 's32[1]{0}', space=sflag, size = 0x4, scoped, tag = 'scoped memory for tpu_custom_call.1']
    %10 = vsyncpa [#allocation3], 0
    // Predicated region
    $region2: #{tpu_custom_call.1} parent=1 // pred_check
      _
    $region3: #{tpu_custom_call.1} parent=1 // pred_check_branch
      %12 = sbr.rel (0) target = $region5
    $region4: #{tpu_custom_call.1} parent=1 // pred_region
      _
    $region5: #{tpu_custom_call.1} parent=1 // pred_fallthru
      _
    // Predicated region
    $region6: #{tpu_custom_call.1} parent=1 // pred_check
      _
    $region7: #{tpu_custom_call.1} parent=1 // pred_check_branch
      %14 = sbr.rel (0) target = $region9
    $region8: #{tpu_custom_call.1} parent=1 // pred_region
      _
    $region9: #{tpu_custom_call.1} parent=1 // pred_fallthru
      _
    // Predicated region
    $region10: #{tpu_custom_call.1} parent=1 // pred_check
      _
    $region11: #{tpu_custom_call.1} parent=1 // pred_check_branch
      %16 = sbr.rel (0) target = $region13
    $region12: #{tpu_custom_call.1} parent=1 // pred_region
      _
    $region13: #{tpu_custom_call.1} parent=1 // pred_fallthru
      _
    // Predicated region
    $region14: #{tpu_custom_call.1} parent=1 // pred_check
      _
    $region15: #{tpu_custom_call.1} parent=1 // pred_check_branch
      %18 = sbr.rel (0) target = $region17
    $region16: #{tpu_custom_call.1} parent=1 // pred_region
      _
    $region17: #{tpu_custom_call.1} parent=1 // pred_fallthru
      _
    // Predicated region
    $region18: #{tpu_custom_call.1} parent=1 // pred_check
      _
    $region19: #{tpu_custom_call.1} parent=1 // pred_check_branch
      %20 = sbr.rel (0) target = $region21
    $region20: #{tpu_custom_call.1} parent=1 // pred_region
      _
    $region21: #{tpu_custom_call.1} parent=1 // pred_fallthru
      _
    %v22 = vld [vmem:[%s1] sm:$0xff]
    %v23 = vld [vmem:[%s1 + $0x8] sm:$0xff]
    %v24 = vld [vmem:[%s1 + $0x10] sm:$0xff]
    %v25 = vld [vmem:[%s1 + $0x18] sm:$0xff]
    %v26 = vld [vmem:[%s1 + $0x20] sm:$0xff]
    %v27 = vld [vmem:[%s1 + $0x28] sm:$0xff]
    %v28 = vld [vmem:[%s1 + $0x30] sm:$0xff]
    %v29 = vld [vmem:[%s1 + $0x38] sm:$0xff]
    %v30 = vld [vmem:[%s3] sm:$0xf]
    %v31 = vld [vmem:[%s3 + $0x4] sm:$0xf]
    %v32 = vld [vmem:[%s3 + $0x8] sm:$0xf]
    %v33 = vld [vmem:[%s3 + $0xc] sm:$0xf]
    %v34 = vld [vmem:[%s3 + $0x10] sm:$0xf]
    %v35 = vld [vmem:[%s3 + $0x14] sm:$0xf]
    %v36 = vld [vmem:[%s3 + $0x18] sm:$0xf]
    %v37 = vld [vmem:[%s3 + $0x1c] sm:$0xf]
    %v38 = vld [vmem:[%s3 + $0x20] sm:$0xf]
    %v39 = vld [vmem:[%s3 + $0x24] sm:$0xf]
    %v40 = vld [vmem:[%s3 + $0x28] sm:$0xf]
    %v41 = vld [vmem:[%s3 + $0x2c] sm:$0xf]
    %v42 = vld [vmem:[%s3 + $0x30] sm:$0xf]
    %v43 = vld [vmem:[%s3 + $0x34] sm:$0xf]
    %v44 = vld [vmem:[%s3 + $0x38] sm:$0xf]
    %v45 = vld [vmem:[%s3 + $0x3c] sm:$0xf]
    %v46 = vld [vmem:[%s3 + $0x40] sm:$0xf]
    %v47 = vld [vmem:[%s3 + $0x44] sm:$0xf]
    %v48 = vld [vmem:[%s3 + $0x48] sm:$0xf]
    %v49 = vld [vmem:[%s3 + $0x4c] sm:$0xf]
    %v50 = vld [vmem:[%s3 + $0x50] sm:$0xf]
    %v51 = vld [vmem:[%s3 + $0x54] sm:$0xf]
    %v52 = vld [vmem:[%s3 + $0x58] sm:$0xf]
    %v53 = vld [vmem:[%s3 + $0x5c] sm:$0xf]
    %v54 = vld [vmem:[%s3 + $0x60] sm:$0xf]
    %v55 = vld [vmem:[%s3 + $0x64] sm:$0xf]
    %v56 = vld [vmem:[%s3 + $0x68] sm:$0xf]
    %v57 = vld [vmem:[%s3 + $0x6c] sm:$0xf]
    %v58 = vld [vmem:[%s3 + $0x70] sm:$0xf]
    %v59 = vld [vmem:[%s3 + $0x74] sm:$0xf]
    %v60 = vld [vmem:[%s3 + $0x78] sm:$0xf]
    %v61 = vld [vmem:[%s3 + $0x7c] sm:$0xf]
    %v62 = vld [vmem:[%s2] sm:$0x3]
    %v63 = vld [vmem:[%s4] sm:$0x1]
    %v64 = vld [vmem:[%s0] sm:$0xff]
    %v65 = vld [vmem:[%s0 + $0x8] sm:$0xff]
    %v66 = vpack.c.bf16 %v65, %v64
    %v68 = vperm.slane %v62, 0
    %v69 = vperm.slane %v62, 1
    %v80 = vunpack.c.l.b16 %v22
    %v81 = vunpack.c.h.b16 %v22
    %v82 = vunpack.c.l.b16 %v23
    %v83 = vunpack.c.h.b16 %v23
    %v84 = vunpack.c.l.b16 %v24
    %v85 = vunpack.c.h.b16 %v24
    %v86 = vunpack.c.l.b16 %v25
    %v87 = vunpack.c.h.b16 %v25
    %v88 = vunpack.c.l.b16 %v26
    %v89 = vunpack.c.h.b16 %v26
    %v90 = vunpack.c.l.b16 %v27
    %v91 = vunpack.c.h.b16 %v27
    %v92 = vunpack.c.l.b16 %v28
    %v93 = vunpack.c.h.b16 %v28
    %v94 = vunpack.c.l.b16 %v29
    %v95 = vunpack.c.h.b16 %v29
    %v96 = vpack.c.b16 %v82, %v80
    %v97 = vpack.c.b16 %v83, %v81
    %v98 = vpack.c.b16 %v86, %v84
    %v99 = vpack.c.b16 %v87, %v85
    %v100 = vpack.c.b16 %v90, %v88
    %v101 = vpack.c.b16 %v91, %v89
    %v102 = vpack.c.b16 %v94, %v92
    %v103 = vpack.c.b16 %v95, %v93
    %vm112 = vcmask 523264
    %v114 = vsel %vm112, %v66, 0
    %116 = vmatpush.bf16.msra.mxu0 0
    %117 = vmatpush.bf16.msra.mxu0 0
    %118 = vmatpush.bf16.msra.mxu0 0
    %119 = vmatpush.bf16.msra.mxu0 0
    %120 = vmatpush.bf16.msra.mxu0 %v102
    %121 = vmatpush.bf16.msra.mxu0 %v100
    %122 = vmatpush.bf16.msra.mxu0 %v98
    %123 = vmatpush.bf16.msra.mxu0 %v96
    %124 = vmatmul.bf16.gmra.mxu0 %v114
    %v125 = vpop.f32.mrf.mxu0
    %v126 = vadd.f32 %v68, %v125
    %v127 = vpop.f32.mrf.mxu0
    %v128 = vadd.f32 %v68, %v127
    %129 = vdwg.mxu0
    %130 = vmatpush.bf16.msra.mxu0 0
    %131 = vmatpush.bf16.msra.mxu0 0
    %132 = vmatpush.bf16.msra.mxu0 0
    %133 = vmatpush.bf16.msra.mxu0 0
    %134 = vmatpush.bf16.msra.mxu0 %v103
    %135 = vmatpush.bf16.msra.mxu0 %v101
    %136 = vmatpush.bf16.msra.mxu0 %v99
    %137 = vmatpush.bf16.msra.mxu0 %v97
    %138 = vmatmul.bf16.gmra.mxu0 %v114
    %v139 = vpop.f32.mrf.mxu0
    %v140 = vadd.f32 %v69, %v139
    %v141 = vpop.f32.mrf.mxu0
    %v142 = vadd.f32 %v69, %v141
    %143 = vdwg.mxu0
    %v144 = vmax.f32 %v126, 0.0
    %v145 = vmax.f32 %v140, 0.0
    %v146 = vmax.f32 %v128, 0.0
    %v147 = vmax.f32 %v142, 0.0
    %v148 = vpack.c.bf16 %v146, %v144
    %v149 = vpack.c.bf16 %v147, %v145
    %v151 = vperm.slane %v63, 0
    %v185 = vunpack.c.l.b16 %v30
    %v186 = vunpack.c.l.b16 %v31
    %v187 = vunpack.c.l.b16 %v32
    %v188 = vunpack.c.l.b16 %v33
    %v189 = vunpack.c.l.b16 %v34
    %v190 = vunpack.c.l.b16 %v35
    %v191 = vunpack.c.l.b16 %v36
    %v192 = vunpack.c.l.b16 %v37
    %v193 = vunpack.c.l.b16 %v38
    %v194 = vunpack.c.l.b16 %v39
    %v195 = vunpack.c.l.b16 %v40
    %v196 = vunpack.c.l.b16 %v41
    %v197 = vunpack.c.l.b16 %v42
    %v198 = vunpack.c.l.b16 %v43
    %v199 = vunpack.c.l.b16 %v44
    %v200 = vunpack.c.l.b16 %v45
    %v201 = vunpack.c.l.b16 %v46
    %v202 = vunpack.c.l.b16 %v47
    %v203 = vunpack.c.l.b16 %v48
    %v204 = vunpack.c.l.b16 %v49
    %v205 = vunpack.c.l.b16 %v50
    %v206 = vunpack.c.l.b16 %v51
    %v207 = vunpack.c.l.b16 %v52
    %v208 = vunpack.c.l.b16 %v53
    %v209 = vunpack.c.l.b16 %v54
    %v210 = vunpack.c.l.b16 %v55
    %v211 = vunpack.c.l.b16 %v56
    %v212 = vunpack.c.l.b16 %v57
    %v213 = vunpack.c.l.b16 %v58
    %v214 = vunpack.c.l.b16 %v59
    %v215 = vunpack.c.l.b16 %v60
    %v216 = vunpack.c.l.b16 %v61
    %v217 = vpack.c.b16 %v186, %v185
    %v218 = vpack.c.b16 %v188, %v187
    %v219 = vpack.c.b16 %v190, %v189
    %v220 = vpack.c.b16 %v192, %v191
    %v221 = vpack.c.b16 %v194, %v193
    %v222 = vpack.c.b16 %v196, %v195
    %v223 = vpack.c.b16 %v198, %v197
    %v224 = vpack.c.b16 %v200, %v199
    %v225 = vpack.c.b16 %v202, %v201
    %v226 = vpack.c.b16 %v204, %v203
    %v227 = vpack.c.b16 %v206, %v205
    %v228 = vpack.c.b16 %v208, %v207
    %v229 = vpack.c.b16 %v210, %v209
    %v230 = vpack.c.b16 %v212, %v211
    %v231 = vpack.c.b16 %v214, %v213
    %v232 = vpack.c.b16 %v216, %v215
    %249 = vmatpush.bf16.msra.mxu0 %v224
    %250 = vmatpush.bf16.msra.mxu0 %v223
    %251 = vmatpush.bf16.msra.mxu0 %v222
    %252 = vmatpush.bf16.msra.mxu0 %v221
    %253 = vmatpush.bf16.msra.mxu0 %v220
    %254 = vmatpush.bf16.msra.mxu0 %v219
    %255 = vmatpush.bf16.msra.mxu0 %v218
    %256 = vmatpush.bf16.msra.mxu0 %v217
    %257 = vmatmul.bf16.gmra.mxu0 %v148
    %v258 = vpop.f32.mrf.mxu0
    %v259 = vadd.f32 %v151, %v258
    %v260 = vpop.f32.mrf.mxu0
    %v261 = vadd.f32 %v151, %v260
    %262 = vdwg.mxu0
    %263 = vmatpush.bf16.msra.mxu0 %v232
    %264 = vmatpush.bf16.msra.mxu0 %v231
    %265 = vmatpush.bf16.msra.mxu0 %v230
    %266 = vmatpush.bf16.msra.mxu0 %v229
    %267 = vmatpush.bf16.msra.mxu0 %v228
    %268 = vmatpush.bf16.msra.mxu0 %v227
    %269 = vmatpush.bf16.msra.mxu0 %v226
    %270 = vmatpush.bf16.msra.mxu0 %v225
    %271 = vmatmul.bf16.gmra.mxu0 %v149
    %v272 = vpop.f32.mrf.mxu0
    %v273 = vadd.f32 %v259, %v272
    %v274 = vpop.f32.mrf.mxu0
    %v275 = vadd.f32 %v261, %v274
    %276 = vdwg.mxu0
    %277 = vst.msk [vmem:[#allocation2] sm:$0xff] %vm112, %v273
    %278 = vst.msk [vmem:[#allocation2 + $0x8] sm:$0xff] %vm112, %v275
    // Predicated region
    $region22: #{tpu_custom_call.1} parent=1 // pred_check
      _
    $region23: #{tpu_custom_call.1} parent=1 // pred_check_branch
      %280 = sbr.rel (0) target = $region25
    $region24: #{tpu_custom_call.1} parent=1 // pred_region
      %282 = vsyncadd [#allocation3], 0
      %s283 = sshll.u32 [#allocation2], 4
      %s284 = int_to_ptr.vmem [resolvable:$true] %s283
      %s285 = sshll.u32 %s5, 4
      %s286 = int_to_ptr.hbm [resolvable:$true] %s285
      %291 = dma.vmem_to_hbm [thread:$0]  %s284, 256, %s286, [#allocation3], 128, 128, 8
    $region25: #{tpu_custom_call.1} parent=1 // pred_fallthru
      _
    // Predicated region
    $region26: #{tpu_custom_call.1} parent=1 // pred_check
      _
    $region27: #{tpu_custom_call.1} parent=1 // pred_check_branch
      %293 = sbr.rel (0) target = $region29
    $region28: #{tpu_custom_call.1} parent=1 // pred_region
      %295 = dma.done [#allocation3], 256
    $region29: #{tpu_custom_call.1} parent=1 // pred_fallthru
      _
    %296 = vsyncpa [#allocation3], 1

// kernel: tpu_custom_call.1
$region0: #{tpu_custom_call.1}
  #allocation0 [shape = 'u32[]', space=smem, size = 0x4, offset = 0x4, fixed_abs, tag = 'smem constant byte address 0x4 - core index']
  #allocation1 [shape = 'u32[72,128]{1,0:T(1,128)}', space=vmem, size = 0x9000, scoped, tag = 'internal scratch']
  %s0 = inlined_call_operand.vmem [shape: f32[16,64], index: 0, kind: input, shape index: {}]
  %s1 = inlined_call_operand.vmem [shape: bf16[64,256], index: 1, kind: input, shape index: {}]
  %s2 = inlined_call_operand.vmem [shape: f32[1,256], index: 2, kind: input, shape index: {}]
  %s3 = inlined_call_operand.vmem [shape: bf16[256,64], index: 3, kind: input, shape index: {}]
  %s4 = inlined_call_operand.vmem [shape: f32[1,64], index: 4, kind: input, shape index: {}]
  %s5 = inlined_call_operand.hbm [shape: f32[16,64], index: 5, kind: output, shape index: {}]
  %s6 = sld [smem:[#allocation0]]
  $region30: #{tpu_custom_call.1} parent=0
    _
  %s8 = ssub.s32 1, %s6
  %s9 = scalar_select 0, %s8, %s6
  $region1: #{tpu_custom_call.1} parent=0
    #allocation2 [shape = 'u8[8192]{0}', space=vmem, size = 0x2000, scoped, tag = 'output window, operand 0, single buffered']
    #allocation3 [shape = 's32[1]{0}', space=sflag, size = 0x4, scoped, tag = 'scoped memory for tpu_custom_call.1']
    %10 = vsyncpa [#allocation3], 0
    // Predicated region
    $region2: #{tpu_custom_call.1} parent=1 // pred_check
      _
    $region3: #{tpu_custom_call.1} parent=1 // pred_check_branch
      %12 = sbr.rel (0) target = $region5
    $region4: #{tpu_custom_call.1} parent=1 // pred_region
      _
    $region5: #{tpu_custom_call.1} parent=1 // pred_fallthru
      _
    // Predicated region
    $region6: #{tpu_custom_call.1} parent=1 // pred_check
      _
    $region7: #{tpu_custom_call.1} parent=1 // pred_check_branch
      %14 = sbr.rel (0) target = $region9
    $region8: #{tpu_custom_call.1} parent=1 // pred_region
      _
    $region9: #{tpu_custom_call.1} parent=1 // pred_fallthru
      _
    // Predicated region
    $region10: #{tpu_custom_call.1} parent=1 // pred_check
      _
    $region11: #{tpu_custom_call.1} parent=1 // pred_check_branch
      %16 = sbr.rel (0) target = $region13
    $region12: #{tpu_custom_call.1} parent=1 // pred_region
      _
    $region13: #{tpu_custom_call.1} parent=1 // pred_fallthru
      _
    // Predicated region
    $region14: #{tpu_custom_call.1} parent=1 // pred_check
      _
    $region15: #{tpu_custom_call.1} parent=1 // pred_check_branch
      %18 = sbr.rel (0) target = $region17
    $region16: #{tpu_custom_call.1} parent=1 // pred_region
      _
    $region17: #{tpu_custom_call.1} parent=1 // pred_fallthru
      _
    // Predicated region
    $region18: #{tpu_custom_call.1} parent=1 // pred_check
      _
    $region19: #{tpu_custom_call.1} parent=1 // pred_check_branch
      %20 = sbr.rel (0) target = $region21
    $region20: #{tpu_custom_call.1} parent=1 // pred_region
      _
    $region21: #{tpu_custom_call.1} parent=1 // pred_fallthru
      _
    %v22 = vld [vmem:[%s1] sm:$0xff]
    %v23 = vld [vmem:[%s1 + $0x8] sm:$0xff]
    %v24 = vld [vmem:[%s1 + $0x10] sm:$0xff]
    %v25 = vld [vmem:[%s1 + $0x18] sm:$0xff]
    %v26 = vld [vmem:[%s1 + $0x20] sm:$0xff]
    %v27 = vld [vmem:[%s1 + $0x28] sm:$0xff]
    %v28 = vld [vmem:[%s1 + $0x30] sm:$0xff]
    %v29 = vld [vmem:[%s1 + $0x38] sm:$0xff]
    %v30 = vld [vmem:[%s3] sm:$0xf]
    %v31 = vld [vmem:[%s3 + $0x4] sm:$0xf]
    %v32 = vld [vmem:[%s3 + $0x8] sm:$0xf]
    %v33 = vld [vmem:[%s3 + $0xc] sm:$0xf]
    %v34 = vld [vmem:[%s3 + $0x10] sm:$0xf]
    %v35 = vld [vmem:[%s3 + $0x14] sm:$0xf]
    %v36 = vld [vmem:[%s3 + $0x18] sm:$0xf]
    %v37 = vld [vmem:[%s3 + $0x1c] sm:$0xf]
    %v38 = vld [vmem:[%s3 + $0x20] sm:$0xf]
    %v39 = vld [vmem:[%s3 + $0x24] sm:$0xf]
    %v40 = vld [vmem:[%s3 + $0x28] sm:$0xf]
    %v41 = vld [vmem:[%s3 + $0x2c] sm:$0xf]
    %v42 = vld [vmem:[%s3 + $0x30] sm:$0xf]
    %v43 = vld [vmem:[%s3 + $0x34] sm:$0xf]
    %v44 = vld [vmem:[%s3 + $0x38] sm:$0xf]
    %v45 = vld [vmem:[%s3 + $0x3c] sm:$0xf]
    %v46 = vld [vmem:[%s3 + $0x40] sm:$0xf]
    %v47 = vld [vmem:[%s3 + $0x44] sm:$0xf]
    %v48 = vld [vmem:[%s3 + $0x48] sm:$0xf]
    %v49 = vld [vmem:[%s3 + $0x4c] sm:$0xf]
    %v50 = vld [vmem:[%s3 + $0x50] sm:$0xf]
    %v51 = vld [vmem:[%s3 + $0x54] sm:$0xf]
    %v52 = vld [vmem:[%s3 + $0x58] sm:$0xf]
    %v53 = vld [vmem:[%s3 + $0x5c] sm:$0xf]
    %v54 = vld [vmem:[%s3 + $0x60] sm:$0xf]
    %v55 = vld [vmem:[%s3 + $0x64] sm:$0xf]
    %v56 = vld [vmem:[%s3 + $0x68] sm:$0xf]
    %v57 = vld [vmem:[%s3 + $0x6c] sm:$0xf]
    %v58 = vld [vmem:[%s3 + $0x70] sm:$0xf]
    %v59 = vld [vmem:[%s3 + $0x74] sm:$0xf]
    %v60 = vld [vmem:[%s3 + $0x78] sm:$0xf]
    %v61 = vld [vmem:[%s3 + $0x7c] sm:$0xf]
    %v62 = vld [vmem:[%s2] sm:$0x3]
    %v63 = vld [vmem:[%s4] sm:$0x1]
    %v64 = vld [vmem:[%s0] sm:$0xff]
    %v65 = vld [vmem:[%s0 + $0x8] sm:$0xff]
    %v66 = vpack.c.bf16 %v65, %v64
    %v68 = vperm.slane %v62, 0
    %v69 = vperm.slane %v62, 1
    %v80 = vunpack.c.l.b16 %v22
    %v81 = vunpack.c.h.b16 %v22
    %v82 = vunpack.c.l.b16 %v23
    %v83 = vunpack.c.h.b16 %v23
    %v84 = vunpack.c.l.b16 %v24
    %v85 = vunpack.c.h.b16 %v24
    %v86 = vunpack.c.l.b16 %v25
    %v87 = vunpack.c.h.b16 %v25
    %v88 = vunpack.c.l.b16 %v26
    %v89 = vunpack.c.h.b16 %v26
    %v90 = vunpack.c.l.b16 %v27
    %v91 = vunpack.c.h.b16 %v27
    %v92 = vunpack.c.l.b16 %v28
    %v93 = vunpack.c.h.b16 %v28
    %v94 = vunpack.c.l.b16 %v29
    %v95 = vunpack.c.h.b16 %v29
    %v96 = vpack.c.b16 %v82, %v80
    %v97 = vpack.c.b16 %v83, %v81
    %v98 = vpack.c.b16 %v86, %v84
    %v99 = vpack.c.b16 %v87, %v85
    %v100 = vpack.c.b16 %v90, %v88
    %v101 = vpack.c.b16 %v91, %v89
    %v102 = vpack.c.b16 %v94, %v92
    %v103 = vpack.c.b16 %v95, %v93
    %vm112 = vcmask 523264
    %v114 = vsel %vm112, %v66, 0
    %116 = vmatpush.bf16.msra.mxu0 0
    %117 = vmatpush.bf16.msra.mxu0 0
    %118 = vmatpush.bf16.msra.mxu0 0
    %119 = vmatpush.bf16.msra.mxu0 0
    %120 = vmatpush.bf16.msra.mxu0 %v102
    %121 = vmatpush.bf16.msra.mxu0 %v100
    %122 = vmatpush.bf16.msra.mxu0 %v98
    %123 = vmatpush.bf16.msra.mxu0 %v96
    %124 = vmatmul.bf16.gmra.mxu0 %v114
    %v125 = vpop.f32.mrf.mxu0
    %v126 = vadd.f32 %v68, %v125
    %v127 = vpop.f32.mrf.mxu0
    %v128 = vadd.f32 %v68, %v127
    %129 = vdwg.mxu0
    %130 = vmatpush.bf16.msra.mxu0 0
    %131 = vmatpush.bf16.msra.mxu0 0
    %132 = vmatpush.bf16.msra.mxu0 0
    %133 = vmatpush.bf16.msra.mxu0 0
    %134 = vmatpush.bf16.msra.mxu0 %v103
    %135 = vmatpush.bf16.msra.mxu0 %v101
    %136 = vmatpush.bf16.msra.mxu0 %v99
    %137 = vmatpush.bf16.msra.mxu0 %v97
    %138 = vmatmul.bf16.gmra.mxu0 %v114
    %v139 = vpop.f32.mrf.mxu0
    %v140 = vadd.f32 %v69, %v139
    %v141 = vpop.f32.mrf.mxu0
    %v142 = vadd.f32 %v69, %v141
    %143 = vdwg.mxu0
    %v144 = vmax.f32 %v126, 0.0
    %v145 = vmax.f32 %v140, 0.0
    %v146 = vmax.f32 %v128, 0.0
    %v147 = vmax.f32 %v142, 0.0
    %v148 = vpack.c.bf16 %v146, %v144
    %v149 = vpack.c.bf16 %v147, %v145
    %v151 = vperm.slane %v63, 0
    %v185 = vunpack.c.l.b16 %v30
    %v186 = vunpack.c.l.b16 %v31
    %v187 = vunpack.c.l.b16 %v32
    %v188 = vunpack.c.l.b16 %v33
    %v189 = vunpack.c.l.b16 %v34
    %v190 = vunpack.c.l.b16 %v35
    %v191 = vunpack.c.l.b16 %v36
    %v192 = vunpack.c.l.b16 %v37
    %v193 = vunpack.c.l.b16 %v38
    %v194 = vunpack.c.l.b16 %v39
    %v195 = vunpack.c.l.b16 %v40
    %v196 = vunpack.c.l.b16 %v41
    %v197 = vunpack.c.l.b16 %v42
    %v198 = vunpack.c.l.b16 %v43
    %v199 = vunpack.c.l.b16 %v44
    %v200 = vunpack.c.l.b16 %v45
    %v201 = vunpack.c.l.b16 %v46
    %v202 = vunpack.c.l.b16 %v47
    %v203 = vunpack.c.l.b16 %v48
    %v204 = vunpack.c.l.b16 %v49
    %v205 = vunpack.c.l.b16 %v50
    %v206 = vunpack.c.l.b16 %v51
    %v207 = vunpack.c.l.b16 %v52
    %v208 = vunpack.c.l.b16 %v53
    %v209 = vunpack.c.l.b16 %v54
    %v210 = vunpack.c.l.b16 %v55
    %v211 = vunpack.c.l.b16 %v56
    %v212 = vunpack.c.l.b16 %v57
    %v213 = vunpack.c.l.b16 %v58
    %v214 = vunpack.c.l.b16 %v59
    %v215 = vunpack.c.l.b16 %v60
    %v216 = vunpack.c.l.b16 %v61
    %v217 = vpack.c.b16 %v186, %v185
    %v218 = vpack.c.b16 %v188, %v187
    %v219 = vpack.c.b16 %v190, %v189
    %v220 = vpack.c.b16 %v192, %v191
    %v221 = vpack.c.b16 %v194, %v193
    %v222 = vpack.c.b16 %v196, %v195
    %v223 = vpack.c.b16 %v198, %v197
    %v224 = vpack.c.b16 %v200, %v199
    %v225 = vpack.c.b16 %v202, %v201
    %v226 = vpack.c.b16 %v204, %v203
    %v227 = vpack.c.b16 %v206, %v205
    %v228 = vpack.c.b16 %v208, %v207
    %v229 = vpack.c.b16 %v210, %v209
    %v230 = vpack.c.b16 %v212, %v211
    %v231 = vpack.c.b16 %v214, %v213
    %v232 = vpack.c.b16 %v216, %v215
    %249 = vmatpush.bf16.msra.mxu0 %v224
    %250 = vmatpush.bf16.msra.mxu0 %v223
    %251 = vmatpush.bf16.msra.mxu0 %v222
    %252 = vmatpush.bf16.msra.mxu0 %v221
    %253 = vmatpush.bf16.msra.mxu0 %v220
    %254 = vmatpush.bf16.msra.mxu0 %v219
    %255 = vmatpush.bf16.msra.mxu0 %v218
    %256 = vmatpush.bf16.msra.mxu0 %v217
    %257 = vmatmul.bf16.gmra.mxu0 %v148
    %v258 = vpop.f32.mrf.mxu0
    %v259 = vadd.f32 %v151, %v258
    %v260 = vpop.f32.mrf.mxu0
    %v261 = vadd.f32 %v151, %v260
    %262 = vdwg.mxu0
    %263 = vmatpush.bf16.msra.mxu0 %v232
    %264 = vmatpush.bf16.msra.mxu0 %v231
    %265 = vmatpush.bf16.msra.mxu0 %v230
    %266 = vmatpush.bf16.msra.mxu0 %v229
    %267 = vmatpush.bf16.msra.mxu0 %v228
    %268 = vmatpush.bf16.msra.mxu0 %v227
    %269 = vmatpush.bf16.msra.mxu0 %v226
    %270 = vmatpush.bf16.msra.mxu0 %v225
    %271 = vmatmul.bf16.gmra.mxu0 %v149
    %v272 = vpop.f32.mrf.mxu0
    %v273 = vadd.f32 %v259, %v272
    %v274 = vpop.f32.mrf.mxu0
    %v275 = vadd.f32 %v261, %v274
    %276 = vdwg.mxu0
    %277 = vst.msk [vmem:[#allocation2] sm:$0xff] %vm112, %v273
    %278 = vst.msk [vmem:[#allocation2 + $0x8] sm:$0xff] %vm112, %v275
    // Predicated region
    $region22: #{tpu_custom_call.1} parent=1 // pred_check
      _
    $region23: #{tpu_custom_call.1} parent=1 // pred_check_branch
      %280 = sbr.rel (0) target = $region25
    $region24: #{tpu_custom_call.1} parent=1 // pred_region
      %282 = vsyncadd [#allocation3], 0
      %s283 = sshll.u32 [#allocation2], 4
      %s284 = int_to_ptr.vmem [resolvable:$true] %s283
      %s285 = sshll.u32 %s5, 4
      %s286 = int_to_ptr.hbm [resolvable:$true] %s285
      %291 = dma.vmem_to_hbm [thread:$0]  %s284, 256, %s286, [#allocation3], 128, 128, 8
    $region25: #{tpu_custom_call.1} parent=1 // pred_fallthru
      _
    // Predicated region
    $region26: #{tpu_custom_call.1} parent=1 // pred_check
      _
    $region27: #{tpu_custom_call.1} parent=1 // pred_check_branch
      %293 = sbr.rel (0) target = $region29
    $region28: #{tpu_custom_call.1} parent=1 // pred_region
      %295 = dma.done [#allocation3], 256
    $region29: #{tpu_custom_call.1} parent=1 // pred_fallthru
      _
    %296 = vsyncpa [#allocation3], 1

</llo_original>
